<compile_context>
chip_gen: v7x
topology: tpu7x:2x2x1
jax: 0.10.0
libtpu: 0.0.40
codegen_flags: <defaults>
</compile_context>

<pallas_src>
import functools

import jax
import jax.numpy as jnp
from jax import lax
from jax.experimental import pallas as pl
from jax.experimental.pallas import tpu as pltpu


def _focal_loss_kernel(logits_ref, targets_ref, alpha_ref, out_ref, acc_ref, *,
                       gamma: float, average: bool, n_rows: int):
    pid = pl.program_id(0)

    @pl.when(pid == 0)
    def _init():
        acc_ref[...] = jnp.zeros_like(acc_ref)

    x = logits_ref[...].astype(jnp.float32)          # (TN, C)
    t = targets_ref[...]                             # (TN, 1) int32 (-1 = pad)
    a = alpha_ref[...].astype(jnp.float32)           # (1, C)

    # Numerically stable log-softmax pieces (no full (TN, C) divide).
    m = jnp.max(x, axis=1, keepdims=True)            # (TN, 1)
    xs = x - m                                       # (TN, C)
    z = jnp.sum(jnp.exp(xs), axis=1, keepdims=True)  # (TN, 1)

    # One-hot gather of the target logit and per-class alpha
    # (class_mask / alpha[targets] in the PyTorch module).  Padded rows have
    # target == -1 -> mask all-False -> alpha_n == 0 -> zero contribution.
    # NOTE: out-of-range (>= C) targets are not guarded, matching the module.
    col = lax.broadcasted_iota(jnp.int32, x.shape, 1)                 # (TN, C)
    mask = col == t                                                   # (TN, C)
    x_t = jnp.sum(jnp.where(mask, xs, 0.0), axis=1, keepdims=True)    # (TN, 1)
    alpha_n = jnp.sum(jnp.where(mask, a, 0.0), axis=1, keepdims=True)

    log_p = x_t - jnp.log(z)               # = log(softmax(x)[target]), (TN, 1)
    probs = jnp.exp(log_p)
    one_minus_p = 1.0 - probs

    g = float(gamma)
    if g == 0.0:
        focal = jnp.ones_like(one_minus_p)
    elif g.is_integer() and g > 0:
        focal = one_minus_p
        for _ in range(int(g) - 1):         # gamma=2 -> a single VPU multiply
            focal = focal * one_minus_p
    else:
        focal = jnp.power(one_minus_p, g)   # non-integer gamma only

    # Per-row accumulation (pure VPU adds); scalar reduce deferred to finalize.
    acc_ref[...] += -alpha_n * focal * log_p            # (TN, 1)

    @pl.when(pid == pl.num_programs(0) - 1)
    def _finalize():
        total = jnp.sum(acc_ref[...])       # single cross-sublane reduce
        if average:                         # /N applied once, not per tile
            total = total / jnp.float32(n_rows)
        out_ref[0, 0] = total


def _choose_tile_rows(n: int, c: int, itemsize: int) -> int:
    # ~8 MiB per logits buffer => ~16 MiB double-buffered: safe for v7x's
    # 32 MiB scoped-VMEM default; generous on v5e/v6e (128 MiB VMEM).
    budget_per_buffer = 8 * 1024 * 1024
    tn = budget_per_buffer // max(1, c * itemsize)
    tn = max(8, min(1024, (tn // 8) * 8))   # >=512 rows amortizes grid-step cost
    n_rounded = ((n + 7) // 8) * 8
    return min(tn, n_rounded)


def focal_loss(logits, targets, alpha, *, gamma: float = 2.0,
               average: bool = True, tile_rows: int | None = None):
    """Focal loss forward (matches FocalLoss.forward).

    Args:
      logits:  (N, C) float array (f32/bf16/f16; upcast happens in-kernel).
      targets: (N,)   integer class ids.
      alpha:   (C,) or (C, 1) per-class weights (module default: ones).
      tile_rows: optional batch tile size (rounded to a multiple of 8).
    Returns:
      scalar float32 loss.
    """
    n, c = logits.shape
    targets2d = targets.reshape(n, 1).astype(jnp.int32)
    alpha_row = jnp.asarray(alpha).reshape(1, c).astype(jnp.float32)

    if tile_rows is None:
        tile_rows = _choose_tile_rows(n, c, logits.dtype.itemsize)
    tile_rows = max(8, (int(tile_rows) // 8) * 8)

    num_tiles = pl.cdiv(n, tile_rows)
    n_pad = num_tiles * tile_rows
    if n_pad != n:
        # Pad ragged batch.  Padded targets are -1 so no class matches and the
        # padded rows contribute exactly zero loss (no in-kernel row masking).
        logits = jnp.pad(logits, ((0, n_pad - n), (0, 0)))
        targets2d = jnp.pad(targets2d, ((0, n_pad - n), (0, 0)),
                            constant_values=-1)

    kernel = functools.partial(_focal_loss_kernel, gamma=float(gamma),
                               average=bool(average), n_rows=n)

    out = pl.pallas_call(
        kernel,
        out_shape=jax.ShapeDtypeStruct((1, 1), jnp.float32),
        grid=(num_tiles,),
        in_specs=[
            pl.BlockSpec((tile_rows, c), lambda i: (i, 0)),   # logits tile
            pl.BlockSpec((tile_rows, 1), lambda i: (i, 0)),   # targets tile
            pl.BlockSpec((1, c), lambda i: (0, 0)),           # alpha (resident)
        ],
        out_specs=pl.BlockSpec(memory_space=pltpu.MemorySpace.SMEM),
        scratch_shapes=[pltpu.VMEM((tile_rows, 1), jnp.float32)],
        compiler_params=pltpu.CompilerParams(
            dimension_semantics=("arbitrary",),   # sequential: resident acc
            vmem_limit_bytes=32 * 1024 * 1024,
        ),
    )(logits, targets2d, alpha_row)
    return out[0, 0]


def focal_loss_ref(logits, targets, alpha, *, gamma=2.0, average=True):
    """Pure-JAX reference mirroring the PyTorch forward."""
    n, c = logits.shape
    p = jax.nn.softmax(logits.astype(jnp.float32), axis=1)
    mask = jax.nn.one_hot(targets, c, dtype=jnp.float32)
    probs = jnp.sum(p * mask, axis=1, keepdims=True)
    alpha_n = (jnp.asarray(alpha).reshape(-1)[targets]
               .reshape(-1, 1).astype(jnp.float32))
    log_p = jnp.log(probs)
    batch_loss = -alpha_n * jnp.power(1.0 - probs, gamma) * log_p
    return jnp.mean(batch_loss) if average else jnp.sum(batch_loss)


if __name__ == "__main__":
    key = jax.random.PRNGKey(0)
    k_logits, k_targets, k_alpha = jax.random.split(key, 3)

    # Case 1: module defaults (alpha=None -> ones(C,1), gamma=2, average=True).
    N, C = 8, 16
    logits = jax.random.normal(k_logits, (N, C), dtype=jnp.float32)
    targets = jax.random.randint(k_targets, (N,), 0, C, dtype=jnp.int32)
    alpha = jnp.ones((C, 1), dtype=jnp.float32)

    loss = jax.block_until_ready(
        focal_loss(logits, targets, alpha, gamma=2.0, average=True))
    ref = focal_loss_ref(logits, targets, alpha, gamma=2.0, average=True)
    assert jnp.allclose(loss, ref, rtol=1e-5, atol=1e-5), (loss, ref)

    # Case 2: ragged batch + multi-step grid (forced small tile), sum
    # reduction, non-uniform alpha, bf16 logits kept native through the spec.
    N2, C2 = 20, 16
    logits2 = jax.random.normal(k_logits, (N2, C2), dtype=jnp.bfloat16)
    targets2 = jax.random.randint(k_targets, (N2,), 0, C2, dtype=jnp.int32)
    alpha2 = jax.random.uniform(k_alpha, (C2, 1), dtype=jnp.float32) + 0.5

    loss2 = jax.block_until_ready(
        focal_loss(logits2, targets2, alpha2, gamma=2.0, average=False,
                   tile_rows=8))
    ref2 = focal_loss_ref(logits2, targets2, alpha2, gamma=2.0, average=False)
    assert jnp.allclose(loss2, ref2, rtol=1e-4, atol=1e-4), (loss2, ref2)

    print("KERNEL_OK")
</pallas_src>

<mosaic_0001>
module attributes {stable_mosaic.version = 11 : i64} {
  func.func @_focal_loss_kernel(%arg0: i32, %arg1: memref<8x16xf32, #tpu.memory_space<vmem>>, %arg2: memref<8x1xi32, #tpu.memory_space<vmem>>, %arg3: memref<1x16xf32, #tpu.memory_space<vmem>>, %arg4: memref<1x1xf32, #tpu.memory_space<smem>>, %arg5: memref<8x1xf32, #tpu.memory_space<vmem>>) attributes {dimension_semantics = [#tpu.dimension_semantics<arbitrary>], iteration_bounds = array<i64: 1>, scalar_prefetch = 0 : i64, scratch_operands = 1 : i64, tpu.core_type = #tpu.core_type<tc>, window_params = [{transform_indices = @transform_0, window_bounds = array<i64: 8, 16>}, {transform_indices = @transform_1, window_bounds = array<i64: 8, 1>}, {pipeline_mode = #tpu.pipeline_mode<synchronous>, transform_indices = @transform_2, window_bounds = array<i64: 1, 16>}, {transform_indices = @transform_3, window_bounds = array<i64: 1, 1>}]} {
    %c0_i32 = arith.constant 0 : i32
    %0 = arith.cmpi eq, %arg0, %c0_i32 : i32
    %1 = arith.extui %0 : i1 to i32
    %c0_i32_0 = arith.constant 0 : i32
    %2 = arith.cmpi ne, %1, %c0_i32_0 : i32
    scf.if %2 {
      %cst_19 = arith.constant 0.000000e+00 : f32
      %42 = vector.broadcast %cst_19 : f32 to vector<8x1xf32>
      %c0_20 = arith.constant 0 : index
      %c0_21 = arith.constant 0 : index
      %43 = vector.load %arg5[%c0_20, %c0_21] : memref<8x1xf32, #tpu.memory_space<vmem>>, vector<8x1xf32>
      tpu.vector_store %arg5[%c0_20, %c0_21], %42 {strides = array<i32>} : memref<8x1xf32, #tpu.memory_space<vmem>>, vector<8x1xf32>,
    } else {
    }
    %c0 = arith.constant 0 : index
    %c0_1 = arith.constant 0 : index
    %3 = vector.load %arg1[%c0, %c0_1] : memref<8x16xf32, #tpu.memory_space<vmem>>, vector<8x16xf32>
    %c0_2 = arith.constant 0 : index
    %c0_3 = arith.constant 0 : index
    %4 = vector.load %arg2[%c0_2, %c0_3] : memref<8x1xi32, #tpu.memory_space<vmem>>, vector<8x1xi32>
    %c0_4 = arith.constant 0 : index
    %c0_5 = arith.constant 0 : index
    %5 = vector.load %arg3[%c0_4, %c0_5] : memref<1x16xf32, #tpu.memory_space<vmem>>, vector<1x16xf32>
    %cst = arith.constant dense<0xFF800000> : vector<8xf32>
    %6 = vector.multi_reduction <maximumf>, %3, %cst [1] : vector<8x16xf32> to vector<8xf32>
    %7 = vector.shape_cast %6 : vector<8xf32> to vector<8x1xf32>
    %8 = vector.broadcast %7 : vector<8x1xf32> to vector<8x16xf32>
    %9 = arith.subf %3, %8 : vector<8x16xf32>
    %10 = math.exp %9 : vector<8x16xf32>
    %cst_6 = arith.constant dense<0.000000e+00> : vector<8xf32>
    %11 = vector.multi_reduction <add>, %10, %cst_6 [1] : vector<8x16xf32> to vector<8xf32>
    %12 = vector.shape_cast %11 : vector<8xf32> to vector<8x1xf32>
    %13 = tpu.iota {dimensions = array<i32: 1>} : vector<8x16xi32>
    %14 = vector.broadcast %4 : vector<8x1xi32> to vector<8x16xi32>
    %15 = arith.cmpi eq, %13, %14 : vector<8x16xi32>
    %cst_7 = arith.constant 0.000000e+00 : f32
    %16 = vector.broadcast %cst_7 : f32 to vector<8x16xf32>
    %17 = arith.select %15, %9, %16 : vector<8x16xi1>, vector<8x16xf32>
    %cst_8 = arith.constant dense<0.000000e+00> : vector<8xf32>
    %18 = vector.multi_reduction <add>, %17, %cst_8 [1] : vector<8x16xf32> to vector<8xf32>
    %19 = vector.shape_cast %18 : vector<8xf32> to vector<8x1xf32>
    %cst_9 = arith.constant 0.000000e+00 : f32
    %20 = vector.shape_cast %5 : vector<1x16xf32> to vector<1x16xf32>
    %21 = vector.broadcast %20 : vector<1x16xf32> to vector<8x16xf32>
    %22 = vector.broadcast %cst_9 : f32 to vector<8x16xf32>
    %23 = arith.select %15, %21, %22 : vector<8x16xi1>, vector<8x16xf32>
    %cst_10 = arith.constant dense<0.000000e+00> : vector<8xf32>
    %24 = vector.multi_reduction <add>, %23, %cst_10 [1] : vector<8x16xf32> to vector<8xf32>
    %25 = vector.shape_cast %24 : vector<8xf32> to vector<8x1xf32>
    %26 = math.log %12 : vector<8x1xf32>
    %27 = arith.subf %19, %26 : vector<8x1xf32>
    %28 = math.exp %27 : vector<8x1xf32>
    %cst_11 = arith.constant 1.000000e+00 : f32
    %29 = vector.broadcast %cst_11 : f32 to vector<8x1xf32>
    %30 = arith.subf %29, %28 : vector<8x1xf32>
    %31 = arith.mulf %30, %30 : vector<8x1xf32>
    %c0_12 = arith.constant 0 : index
    %c0_13 = arith.constant 0 : index
    %32 = vector.load %arg5[%c0_12, %c0_13] : memref<8x1xf32, #tpu.memory_space<vmem>>, vector<8x1xf32>
    %cst_14 = arith.constant 0.000000e+00 : f32
    %33 = vector.broadcast %cst_14 : f32 to vector<8x1xf32>
    %34 = arith.subf %33, %25 : vector<8x1xf32>
    %35 = arith.mulf %34, %31 : vector<8x1xf32>
    %36 = arith.mulf %35, %27 : vector<8x1xf32>
    %37 = arith.addf %32, %36 : vector<8x1xf32>
    %c0_15 = arith.constant 0 : index
    %c0_16 = arith.constant 0 : index
    %38 = vector.load %arg5[%c0_15, %c0_16] : memref<8x1xf32, #tpu.memory_space<vmem>>, vector<8x1xf32>
    tpu.vector_store %arg5[%c0_15, %c0_16], %37 {strides = array<i32>} : memref<8x1xf32, #tpu.memory_space<vmem>>, vector<8x1xf32>,
    %c0_i32_17 = arith.constant 0 : i32
    %39 = arith.cmpi eq, %arg0, %c0_i32_17 : i32
    %40 = arith.extui %39 : i1 to i32
    %c0_i32_18 = arith.constant 0 : i32
    %41 = arith.cmpi ne, %40, %c0_i32_18 : i32
    scf.if %41 {
      %c0_19 = arith.constant 0 : index
      %c0_20 = arith.constant 0 : index
      %42 = vector.load %arg5[%c0_19, %c0_20] : memref<8x1xf32, #tpu.memory_space<vmem>>, vector<8x1xf32>
      %43 = vector.shape_cast %42 : vector<8x1xf32> to vector<1x8x1xf32>
      %cst_21 = arith.constant dense<0.000000e+00> : vector<1xf32>
      %44 = vector.multi_reduction <add>, %43, %cst_21 [1, 2] : vector<1x8x1xf32> to vector<1xf32>
      %45 = vector.shape_cast %44 : vector<1xf32> to vector<1x1x1xf32>
      %46 = vector.extract %45[0, 0, 0] : f32 from vector<1x1x1xf32>
      %cst_22 = arith.constant 8.000000e+00 : f32
      %47 = arith.divf %46, %cst_22 : f32
      %c0_23 = arith.constant 0 : index
      %c0_24 = arith.constant 0 : index
      %48 = memref.load %arg4[%c0_23, %c0_24] : memref<1x1xf32, #tpu.memory_space<smem>>
      memref.store %47, %arg4[%c0_23, %c0_24] : memref<1x1xf32, #tpu.memory_space<smem>>
    } else {
    }
    return
  }
  func.func @transform_0(%arg0: i32) -> (i32, i32) {
    %c0_i32 = arith.constant 0 : i32
    %c0_i32_0 = arith.constant 0 : i32
    return %arg0, %c0_i32 : i32, i32
  }
  func.func @transform_1(%arg0: i32) -> (i32, i32) {
    %c0_i32 = arith.constant 0 : i32
    %c0_i32_0 = arith.constant 0 : i32
    return %arg0, %c0_i32 : i32, i32
  }
  func.func @transform_2(%arg0: i32) -> (i32, i32) {
    %c0_i32 = arith.constant 0 : i32
    %c0_i32_0 = arith.constant 0 : i32
    %c0_i32_1 = arith.constant 0 : i32
    return %c0_i32, %c0_i32_0 : i32, i32
  }
  func.func @transform_3(%arg0: i32) -> (i32, i32) {
    %c0_i32 = arith.constant 0 : i32
    %c0_i32_0 = arith.constant 0 : i32
    %c0_i32_1 = arith.constant 0 : i32
    return %c0_i32, %c0_i32_0 : i32, i32
  }
}

</mosaic_0001>

<llo_original>
// kernel: tpu_custom_call.1
$region0: #{tpu_custom_call.1}
  #allocation0 [shape = 'u32[]', space=smem, size = 0x4, offset = 0x4, fixed_abs, tag = 'smem constant byte address 0x4 - core index']
  #allocation1 [shape = 'u32[144,128]{1,0:T(1,128)}', space=vmem, size = 0x12000, scoped, tag = 'internal scratch']
  #allocation2 [shape = 'f32[8,1]{1,0:T(8,128)}', space=vmem, size = 0x1000, scoped, tag = 'scratch operand']
  %s0 = inlined_call_operand.vmem [shape: f32[8,16], index: 0, kind: input, shape index: {}]
  %s1 = inlined_call_operand.vmem [shape: s32[8,1], index: 1, kind: input, shape index: {}]
  %s2 = inlined_call_operand.vmem [shape: f32[1,16], index: 2, kind: input, shape index: {}]
  %s3 = inlined_call_operand.hbm [shape: f32[1,1], index: 3, kind: output, shape index: {}]
  %s4 = sld [smem:[#allocation0]]
  $region30: #{tpu_custom_call.1} parent=0
    _
  %s6 = ssub.s32 1, %s4
  %s7 = scalar_select 0, %s6, %s4
  $region1: #{tpu_custom_call.1} parent=0
    #allocation3 [shape = 'u8[512]{0}', space=smem, size = 0x200, scoped, tag = 'output window, operand 0, single buffered']
    #allocation4 [shape = 's32[1]{0}', space=sflag, size = 0x4, scoped, tag = 'scoped memory for tpu_custom_call.1']
    %8 = vsyncpa [#allocation4], 0
    // Predicated region
    $region2: #{tpu_custom_call.1} parent=1 // pred_check
      _
    $region3: #{tpu_custom_call.1} parent=1 // pred_check_branch
      %10 = sbr.rel (0) target = $region5
    $region4: #{tpu_custom_call.1} parent=1 // pred_region
      _
    $region5: #{tpu_custom_call.1} parent=1 // pred_fallthru
      _
    // Predicated region
    $region6: #{tpu_custom_call.1} parent=1 // pred_check
      _
    $region7: #{tpu_custom_call.1} parent=1 // pred_check_branch
      %12 = sbr.rel (0) target = $region9
    $region8: #{tpu_custom_call.1} parent=1 // pred_region
      _
    $region9: #{tpu_custom_call.1} parent=1 // pred_fallthru
      _
    // Predicated region
    $region10: #{tpu_custom_call.1} parent=1 // pred_check
      _
    $region11: #{tpu_custom_call.1} parent=1 // pred_check_branch
      %14 = sbr.rel (0) target = $region13
    $region12: #{tpu_custom_call.1} parent=1 // pred_region
      _
    $region13: #{tpu_custom_call.1} parent=1 // pred_fallthru
      _
    %p15 = scmp.eq.s32.totalorder 0, 0
    // Predicated region
    $region14: #{tpu_custom_call.1} parent=1 // pred_check
      %p16 = pneg %p15
    $region15: #{tpu_custom_call.1} parent=1 // pred_check_branch
      %18 = sbr.rel (%p16) target = $region17
    $region16: #{tpu_custom_call.1} parent=1 // pred_region
      %vm19 = vcmask 7168
      %20 = vst.msk [vmem:[#allocation2] sm:$0xff] %vm19, 0.0
    $region17: #{tpu_custom_call.1} parent=1 // pred_fallthru
      _
    %v21 = vld [vmem:[%s0] sm:$0xff]
    %v22 = vld [vmem:[%s1] sm:$0xff]
    %v23 = vld [vmem:[%s2] sm:$0x1]
    %vm24 = vcmask 130048
    %v25 = vsel %vm24, %v21, -inf
    %26 = vmax.xlane.f32.xlu0 %v25
    %v27 = vpop.xlane.xlu0 %26
    %v28 = vsub.f32 %v21, %v27
    %v29 = vmul.f32 %v28, 1.442695
    %v30 = vpow.pop %v29
    %v31 = vsel %vm24, %v30, 0.0
    %32 = vadd.xlane.f32.xlu0 %v31
    %v33 = vpop.xlane.xlu0 %32
    %v34 = vlaneseq
    %v35 = vand.u32 %v34, 127
    %36 = vset.pattern.permute.xlu0 0
    %37 = vperm.xlu0 %36, %v22
    %v38 = vpop.permute.xlu0 %37
    %vm39 = vcmp.eq.s32.totalorder %v35, %v38
    %v40 = vsel %vm39, %v28, 0.0
    %v41 = vsel %vm24, %v40, 0.0
    %42 = vadd.xlane.f32.xlu0 %v41
    %v43 = vpop.xlane.xlu0 %42
    %v45 = vlaneseq
    %v46 = vshrl.u32 %v45, 7
    %v47 = vsub.s32 0, %v46
    %v48 = vrot.slane %v23, %v47
    %v50 = vsel %vm39, %v48, 0.0
    %v51 = vsel %vm24, %v50, 0.0
    %52 = vadd.xlane.f32.xlu0 %v51
    %v53 = vpop.xlane.xlu0 %52
    %v54 = vlog2.pop %v33
    %v55 = vmul.f32 %v54, 0.6931472
    %v56 = vsub.f32 %v43, %v55
    %v57 = vmul.f32 %v56, 1.442695
    %v58 = vpow.pop %v57
    %v59 = vsub.f32 1.0, %v58
    %v60 = vmul.f32 %v59, %v59
    %v61 = vld [vmem:[#allocation2] sm:$0xff]
    %v62 = vsub.f32 0.0, %v53
    %v63 = vmul.f32 %v62, %v60
    %v64 = vmul.f32 %v63, %v56
    %v65 = vadd.f32 %v61, %v64
    %vm66 = vcmask 7168
    %67 = vst.msk [vmem:[#allocation2] sm:$0xff] %vm66, %v65
    // Predicated region
    $region18: #{tpu_custom_call.1} parent=1 // pred_check
      %p68 = pneg %p15
    $region19: #{tpu_custom_call.1} parent=1 // pred_check_branch
      %70 = sbr.rel (%p68) target = $region21
    $region20: #{tpu_custom_call.1} parent=1 // pred_region
      %v71 = vld [vmem:[#allocation2] sm:$0xff]
      %v72 = vsel %vm66, %v71, 0.0
      %73 = vadd.xlane.f32.xlu0 %v72
      %v74 = vpop.xlane.xlu0 %73
      %v75 = vrot.slane %v74, 4
      %v76 = vadd.f32 %v74, %v75
      %v77 = vrot.slane %v76, 2
      %v78 = vadd.f32 %v76, %v77
      %v79 = vrot.slane %v78, 1
      %v80 = vadd.f32 %v78, %v79
      %s81 = vtos %v80
      %v82 = vrcp.pop 8.0
      %s83 = vtos %v82
      %s84 = smul.f32 %s81, %s83
      %s85 = scalar_lea.smem [#allocation3], 0
      %86 = sst [smem:[%s85]] %s84
    $region21: #{tpu_custom_call.1} parent=1 // pred_fallthru
      _
    // Predicated region
    $region22: #{tpu_custom_call.1} parent=1 // pred_check
      _
    $region23: #{tpu_custom_call.1} parent=1 // pred_check_branch
      %88 = sbr.rel (0) target = $region25
    $region24: #{tpu_custom_call.1} parent=1 // pred_region
      %s90 = ssub.s32 16, 16
      %91 = vsyncadd [#allocation4], %s90
      %94 = dma.smem_to_hbm [#allocation3], 16, %s3, [#allocation4]
    $region25: #{tpu_custom_call.1} parent=1 // pred_fallthru
      _
    // Predicated region
    $region26: #{tpu_custom_call.1} parent=1 // pred_check
      _
    $region27: #{tpu_custom_call.1} parent=1 // pred_check_branch
      %96 = sbr.rel (0) target = $region29
    $region28: #{tpu_custom_call.1} parent=1 // pred_region
      %97 = dma.done [#allocation4], 16
    $region29: #{tpu_custom_call.1} parent=1 // pred_fallthru
      _
    %98 = sfence
    %99 = vsyncpa [#allocation4], 1

</llo_original>
